<compile_context>
chip_gen: v7x
topology: tpu7x:2x2x1
jax: 0.10.0
libtpu: 0.0.40
codegen_flags: <defaults>
</compile_context>

<pallas_src>
import jax
import jax.numpy as jnp
from jax.experimental import pallas as pl
from jax.experimental.pallas import tpu as pltpu

# ImageNet normalization constants from the module's __init__.
_TORCH_MEAN = (0.485, 0.456, 0.406)
_TORCH_STD = (0.229, 0.224, 0.225)
_CAFFE_MEAN = (103.939, 116.779, 123.68)

_LANES = 128
_MAX_BLOCK_BYTES_F32 = 4 * 1024 * 1024   # target fused f32 block size (~4 MiB)


def _mode_scale_bias(mode, preceded_by_scaling):
    """Fold the forward pass into out[c] = x[src_c] * scale[c] + bias[c]."""
    if mode == 'torch':
        pre = 1.0 if preceded_by_scaling else (1.0 / 255.0)
        scale = [pre / s for s in _TORCH_STD]
        bias = [-m / s for m, s in zip(_TORCH_MEAN, _TORCH_STD)]
        flip = False
    elif mode == 'tf':
        pre = 1.0 if preceded_by_scaling else (1.0 / 255.0)
        scale = [2.0 * pre] * 3
        bias = [-1.0] * 3
        flip = False
    elif mode == 'caffe':
        pre = 255.0 if preceded_by_scaling else 1.0
        scale = [pre] * 3                    # std = 1.0
        bias = [-m for m in _CAFFE_MEAN]
        flip = True                          # torch.flip along channel dim
    else:
        raise ValueError('Unknown mode: ' + str(mode))
    return scale, bias, flip


def _make_kernel(scale, bias, flip, C):
    """Kernel closed over trace-time constants; blocks are (1, C, BR, LAST)."""
    def kernel(x_ref, o_ref):
        for c in range(C):                              # static unroll over channels
            src = (C - 1 - c) if flip else c            # 'caffe' flip via static view
            xv = x_ref[0, src].astype(jnp.float32)
            o_ref[0, c] = (xv * jnp.float32(scale[c])
                           + jnp.float32(bias[c])).astype(o_ref.dtype)
    return kernel


def preprocess(x, mode='torch', preceded_by_scaling=True):
    """Pallas equivalent of Preprocess.forward for rank-3 (CHW) / rank-4 (NCHW)."""
    squeeze = x.ndim == 3
    if squeeze:
        x = x[None]                          # CHW -> NCHW
    if x.ndim != 4:
        raise ValueError(f'Invalid tensor rank: {x.shape}, '
                         'tensor should have either rank 3 or 4')

    N, C, H, W = x.shape

    # Promote raw-image integer inputs; PyTorch normalization returns float.
    if not jnp.issubdtype(x.dtype, jnp.floating):
        x = x.astype(jnp.float32)
    out_dtype = x.dtype
    itemsize = jnp.dtype(out_dtype).itemsize

    scale, bias, flip = _mode_scale_bias(mode, preceded_by_scaling)
    if mode == 'tf':
        scale = [scale[0]] * C
        bias = [bias[0]] * C
    elif C != 3:
        raise ValueError(f"mode '{mode}' requires 3 channels, got {C}")

    # ---- Choose a lane-friendly spatial view (no pad / slice HBM passes) ----
    L = H * W
    if L % _LANES == 0:
        rows, last = L // _LANES, _LANES     # lane-dense: unmasked 128-wide stores
        xr = x.reshape(N, C, rows, last)     # contiguous collapse -> free metadata op
    else:
        rows, last = H, W                    # natural layout: full W last dim (masked tail)
        xr = x

    # ---- Row tiling: big fused blocks, capped by a ~4 MiB f32 budget --------
    row_bytes_f32 = C * last * 4
    max_br = max(8, (_MAX_BLOCK_BYTES_F32 // row_bytes_f32) // 8 * 8)
    if rows <= max_br:
        BR, n_t = rows, 1                    # full extent -> always a legal block dim
    else:
        BR = max_br                          # multiple of 8; ragged last tile is masked
        n_t = pl.cdiv(rows, BR)

    # v7x megacore: guarantee >= 2 parallel grid steps for single-image calls.
    if N * n_t < 2 and rows >= 16:
        BR = 8 * pl.cdiv(pl.cdiv(rows, 2), 8)
        n_t = pl.cdiv(rows, BR)

    kernel = _make_kernel(scale, bias, flip, C)

    # VMEM budget: double-buffered in + out blocks plus f32 upcast headroom,
    # capped at 32 MiB (safe within v7x's 64 MiB physical VMEM).
    blk_in = C * BR * last * itemsize
    blk_f32 = C * BR * last * 4
    vmem_limit = int(min(max(4 * blk_in + 2 * blk_f32, 8 * 1024 * 1024),
                         32 * 1024 * 1024))

    index_map = lambda n, t: (n, 0, t, 0)

    out = pl.pallas_call(
        kernel,
        out_shape=jax.ShapeDtypeStruct((N, C, rows, last), out_dtype),
        grid_spec=pltpu.PrefetchScalarGridSpec(
            num_scalar_prefetch=0,
            grid=(N, n_t),
            in_specs=[pl.BlockSpec((1, C, BR, last), index_map)],
            out_specs=pl.BlockSpec((1, C, BR, last), index_map),
        ),
        compiler_params=pltpu.CompilerParams(
            dimension_semantics=("parallel", "parallel"),
            vmem_limit_bytes=vmem_limit),
        cost_estimate=pl.CostEstimate(
            flops=2 * N * C * rows * last,
            transcendentals=0,
            bytes_accessed=2 * N * C * rows * last * itemsize),
    )(xr)

    out = out.reshape(N, C, H, W)
    if squeeze:
        out = out[0]
    return out


def _reference(x, mode, preceded_by_scaling):
    """Pure-JAX reference mirroring the PyTorch forward exactly."""
    t = x.astype(jnp.float32) if not jnp.issubdtype(x.dtype, jnp.floating) else x
    ch_axis = 0 if t.ndim == 3 else 1
    if mode == 'caffe':
        t = jnp.flip(t, axis=ch_axis)
        if preceded_by_scaling:
            t = t * 255.0
    elif not preceded_by_scaling:
        t = t / 255.0
    if mode == 'tf':
        t = t * 2 - 1
    shape = (3, 1, 1) if t.ndim == 3 else (1, 3, 1, 1)
    if mode == 'torch':
        m = jnp.asarray(_TORCH_MEAN, jnp.float32).reshape(shape)
        s = jnp.asarray(_TORCH_STD, jnp.float32).reshape(shape)
        t = (t - m) / s
    elif mode == 'caffe':
        m = jnp.asarray(_CAFFE_MEAN, jnp.float32).reshape(shape)
        t = t - m
    return t


if __name__ == "__main__":
    key = jax.random.PRNGKey(0)
    # Small, module-consistent shape: batch=2, 3 RGB channels, 16x16 spatial.
    x = jax.random.uniform(key, (2, 3, 16, 16), dtype=jnp.float32)

    ok = True
    for mode in ('torch', 'tf', 'caffe'):
        for pbs in (True, False):
            got = jax.block_until_ready(
                preprocess(x, mode=mode, preceded_by_scaling=pbs))
            want = _reference(x, mode, pbs)
            ok &= bool(jnp.allclose(got, want, rtol=1e-5, atol=1e-4))

    # H*W not a multiple of 128 -> natural-layout path (no pad/slice passes).
    x2 = jax.random.uniform(jax.random.PRNGKey(1), (2, 3, 20, 30),
                            dtype=jnp.float32)
    got2 = jax.block_until_ready(
        preprocess(x2, mode='caffe', preceded_by_scaling=True))
    ok &= bool(jnp.allclose(got2, _reference(x2, 'caffe', True),
                            rtol=1e-5, atol=1e-4))

    # Rank-3 (CHW) input path.
    x3 = jax.random.uniform(jax.random.PRNGKey(2), (3, 16, 16),
                            dtype=jnp.float32)
    got3 = jax.block_until_ready(preprocess(x3, mode='torch'))
    ok &= bool(jnp.allclose(got3, _reference(x3, 'torch', True),
                            rtol=1e-5, atol=1e-4))

    # Single-image lane-dense path exercising the forced 2-way row split (v7x).
    x4 = jax.random.uniform(jax.random.PRNGKey(3), (1, 3, 64, 96),
                            dtype=jnp.float32)
    got4 = jax.block_until_ready(
        preprocess(x4, mode='tf', preceded_by_scaling=False))
    ok &= bool(jnp.allclose(got4, _reference(x4, 'tf', False),
                            rtol=1e-5, atol=1e-4))

    # Default-configuration run (mode='torch', preceded_by_scaling=True).
    out = jax.block_until_ready(preprocess(x))
    ok &= (out.shape == x.shape and out.dtype == x.dtype)

    if ok:
        print("KERNEL_OK")
</pallas_src>

<mosaic_0001>
module attributes {stable_mosaic.version = 11 : i64} {
  func.func @kernel(%arg0: i32, %arg1: i32, %arg2: memref<1x3x2x128xf32, #tpu.memory_space<vmem>>, %arg3: memref<1x3x2x128xf32, #tpu.memory_space<vmem>>) attributes {dimension_semantics = [#tpu.dimension_semantics<parallel>, #tpu.dimension_semantics<parallel>], iteration_bounds = array<i64: 2, 1>, scalar_prefetch = 0 : i64, scratch_operands = 0 : i64, tpu.core_type = #tpu.core_type<tc>, window_params = [{transform_indices = @transform_0, window_bounds = array<i64: 1, 3, 2, 128>}, {transform_indices = @transform_1, window_bounds = array<i64: 1, 3, 2, 128>}]} {
    %c0 = arith.constant 0 : index
    %c0_0 = arith.constant 0 : index
    %c0_1 = arith.constant 0 : index
    %c0_2 = arith.constant 0 : index
    %0 = vector.load %arg2[%c0, %c0_0, %c0_1, %c0_2] : memref<1x3x2x128xf32, #tpu.memory_space<vmem>>, vector<1x1x2x128xf32>
    %1 = vector.shape_cast %0 : vector<1x1x2x128xf32> to vector<2x128xf32>
    %cst = arith.constant 4.36681223 : f32
    %2 = vector.broadcast %cst : f32 to vector<2x128xf32>
    %3 = arith.mulf %1, %2 : vector<2x128xf32>
    %cst_3 = arith.constant -2.11790395 : f32
    %4 = vector.broadcast %cst_3 : f32 to vector<2x128xf32>
    %5 = arith.addf %3, %4 : vector<2x128xf32>
    %c0_4 = arith.constant 0 : index
    %c0_5 = arith.constant 0 : index
    %c0_6 = arith.constant 0 : index
    %c0_7 = arith.constant 0 : index
    %6 = vector.load %arg3[%c0_4, %c0_5, %c0_6, %c0_7] : memref<1x3x2x128xf32, #tpu.memory_space<vmem>>, vector<1x1x2x128xf32>
    %7 = vector.shape_cast %6 : vector<1x1x2x128xf32> to vector<2x128xf32>
    %8 = vector.shape_cast %5 : vector<2x128xf32> to vector<1x1x2x128xf32>
    tpu.vector_store %arg3[%c0_4, %c0_5, %c0_6, %c0_7], %8 {strides = array<i32>} : memref<1x3x2x128xf32, #tpu.memory_space<vmem>>, vector<1x1x2x128xf32>,
    %c0_8 = arith.constant 0 : index
    %c1 = arith.constant 1 : index
    %c0_9 = arith.constant 0 : index
    %c0_10 = arith.constant 0 : index
    %9 = vector.load %arg2[%c0_8, %c1, %c0_9, %c0_10] : memref<1x3x2x128xf32, #tpu.memory_space<vmem>>, vector<1x1x2x128xf32>
    %10 = vector.shape_cast %9 : vector<1x1x2x128xf32> to vector<2x128xf32>
    %cst_11 = arith.constant 4.46428585 : f32
    %11 = vector.broadcast %cst_11 : f32 to vector<2x128xf32>
    %12 = arith.mulf %10, %11 : vector<2x128xf32>
    %cst_12 = arith.constant -2.03571439 : f32
    %13 = vector.broadcast %cst_12 : f32 to vector<2x128xf32>
    %14 = arith.addf %12, %13 : vector<2x128xf32>
    %c0_13 = arith.constant 0 : index
    %c1_14 = arith.constant 1 : index
    %c0_15 = arith.constant 0 : index
    %c0_16 = arith.constant 0 : index
    %15 = vector.load %arg3[%c0_13, %c1_14, %c0_15, %c0_16] : memref<1x3x2x128xf32, #tpu.memory_space<vmem>>, vector<1x1x2x128xf32>
    %16 = vector.shape_cast %15 : vector<1x1x2x128xf32> to vector<2x128xf32>
    %17 = vector.shape_cast %14 : vector<2x128xf32> to vector<1x1x2x128xf32>
    tpu.vector_store %arg3[%c0_13, %c1_14, %c0_15, %c0_16], %17 {strides = array<i32>} : memref<1x3x2x128xf32, #tpu.memory_space<vmem>>, vector<1x1x2x128xf32>,
    %c0_17 = arith.constant 0 : index
    %c2 = arith.constant 2 : index
    %c0_18 = arith.constant 0 : index
    %c0_19 = arith.constant 0 : index
    %18 = vector.load %arg2[%c0_17, %c2, %c0_18, %c0_19] : memref<1x3x2x128xf32, #tpu.memory_space<vmem>>, vector<1x1x2x128xf32>
    %19 = vector.shape_cast %18 : vector<1x1x2x128xf32> to vector<2x128xf32>
    %cst_20 = arith.constant 4.44444466 : f32
    %20 = vector.broadcast %cst_20 : f32 to vector<2x128xf32>
    %21 = arith.mulf %19, %20 : vector<2x128xf32>
    %cst_21 = arith.constant -1.80444443 : f32
    %22 = vector.broadcast %cst_21 : f32 to vector<2x128xf32>
    %23 = arith.addf %21, %22 : vector<2x128xf32>
    %c0_22 = arith.constant 0 : index
    %c2_23 = arith.constant 2 : index
    %c0_24 = arith.constant 0 : index
    %c0_25 = arith.constant 0 : index
    %24 = vector.load %arg3[%c0_22, %c2_23, %c0_24, %c0_25] : memref<1x3x2x128xf32, #tpu.memory_space<vmem>>, vector<1x1x2x128xf32>
    %25 = vector.shape_cast %24 : vector<1x1x2x128xf32> to vector<2x128xf32>
    %26 = vector.shape_cast %23 : vector<2x128xf32> to vector<1x1x2x128xf32>
    tpu.vector_store %arg3[%c0_22, %c2_23, %c0_24, %c0_25], %26 {strides = array<i32>} : memref<1x3x2x128xf32, #tpu.memory_space<vmem>>, vector<1x1x2x128xf32>,
    return
  }
  func.func @transform_0(%arg0: i32, %arg1: i32) -> (i32, i32, i32, i32) {
    %c0_i32 = arith.constant 0 : i32
    %c0_i32_0 = arith.constant 0 : i32
    %c0_i32_1 = arith.constant 0 : i32
    return %arg0, %c0_i32, %arg1, %c0_i32_0 : i32, i32, i32, i32
  }
  func.func @transform_1(%arg0: i32, %arg1: i32) -> (i32, i32, i32, i32) {
    %c0_i32 = arith.constant 0 : i32
    %c0_i32_0 = arith.constant 0 : i32
    %c0_i32_1 = arith.constant 0 : i32
    return %arg0, %c0_i32, %arg1, %c0_i32_0 : i32, i32, i32, i32
  }
}

</mosaic_0001>

<llo_original>
// kernel: tpu_custom_call.1
$region0: #{tpu_custom_call.1}
  #allocation0 [shape = 'u32[]', space=smem, size = 0x4, offset = 0x4, fixed_abs, tag = 'smem constant byte address 0x4 - core index']
  #allocation1 [shape = 'u32[144,128]{1,0:T(1,128)}', space=vmem, size = 0x12000, scoped, tag = 'internal scratch']
  %s0 = inlined_call_operand.hbm [shape: f32[2,3,2,128], index: 0, kind: input, shape index: {}]
  %s1 = inlined_call_operand.hbm [shape: f32[2,3,2,128], index: 1, kind: output, shape index: {}]
  %s2 = sld [smem:[#allocation0]]
  $region41: #{tpu_custom_call.1} parent=0
    _
  %s4 = ssub.s32 1, %s2
  %s5 = scalar_select 0, %s4, %s2
  $region1: #{tpu_custom_call.1} parent=0
    #allocation2 [shape = 'u8[6144]{0}', space=vmem, size = 0x1800, scoped, tag = 'input window, operand 0']
    #allocation3 [shape = 's32[2]{0}', space=sflag, size = 0x8, scoped, tag = 'scoped memory for tpu_custom_call.1']
    #allocation4 [shape = 's32[2]{0}', space=sflag, size = 0x8, scoped, tag = 'scoped memory for tpu_custom_call.1']
    #allocation5 [shape = 'u8[6144]{0}', space=vmem, size = 0x1800, scoped, tag = 'output window, operand 0']
    %6 = vsyncpa [#allocation3], 0
    %s7 = scalar_lea.sflag [#allocation3], 1
    %8 = vsyncpa %s7, 0
    %9 = vsyncpa [#allocation4], 0
    %s10 = scalar_lea.sflag [#allocation4], 1
    %11 = vsyncpa %s10, 0
    loop: start=0, step=1, limit=4
    $region2: #{tpu_custom_call.1} parent=1 // loop_pre_header
      _
    $region3: #{tpu_custom_call.1} parent=1 // loop_header
      %s13 = sphi 0, %s17
      %p14 = scmp.ge.s32.totalorder %s13, 4
      %s20 = sphi 0, %s32
      %s21 = sphi 0, %s28
      %s22 = sphi 0, %s20
      %s23 = sphi 0, %s21
      %s24 = sphi 0, %s22
      %s25 = sphi 0, %s23
      %s37 = sphi 0, %s39
      %s40 = sphi 0, %s37
      %s41 = sphi 0, %s40
      %s57 = sphi 0, %s41
      %s65 = sphi 0, %s67
      %s68 = sphi 0, %s65
      %s69 = sphi 0, %s68
      %s85 = sphi 0, %s69
    $region4: #{tpu_custom_call.1} parent=1 // loop_header_branch
      %16 = sbr.rel (%p14) target = $region8
    $region5: #{tpu_custom_call.1} parent=1 // loop_body
      %s18 = ssub.s32 %s13, 1
      %s19 = ssub.s32 %s13, 2
      %s26 = sadd.s32 1, %s21
      %p27 = scmp.ge.s32.totalorder %s26, 1
      %s28 = scalar_select %p27, 0, %s26
      %s29 = sadd.s32 1, %s20
      %s30 = scalar_select %p27, %s29, %s20
      %p31 = scmp.ge.s32.totalorder %s30, 2
      %s32 = scalar_select %p31, 0, %s30
      %s33 = ssub.s32 %s20, %s32
      %s34 = ssub.s32 %s21, %s28
      %s35 = sor.u32 %s33, %s34
      %p36 = scmp.eq.s32.totalorder %s35, 0
      %s38 = sadd.s32 %s37, 1
      %s39 = scalar_select %p36, %s37, %s38
      %p42 = pneg %p36
      %p43 = scmp.eq.s32.totalorder %s13, 1
      %p44 = por %p42, %p43
      %p45 = scmp.ne.s32.totalorder %s37, %s40
      %p46 = scmp.eq.s32.totalorder %s13, 0
      %p47 = por %p45, %p46
      %p48 = scmp.ne.s32.totalorder %s37, %s40
      %p49 = scmp.eq.s32.totalorder %s18, 1
      %p50 = por %p48, %p49
      %p51 = scmp.ne.s32.totalorder %s40, %s41
      %p52 = scmp.eq.s32.totalorder %s18, 0
      %p53 = por %p51, %p52
      %p54 = scmp.ne.s32.totalorder %s40, %s41
      %p55 = scmp.eq.s32.totalorder %s19, 1
      %p56 = por %p54, %p55
      %p58 = scmp.ne.s32.totalorder %s41, %s57
      %p59 = scmp.eq.s32.totalorder %s19, 0
      %p60 = por %p58, %p59
      %s61 = ssub.s32 %s20, %s32
      %s62 = ssub.s32 %s21, %s28
      %s63 = sor.u32 %s61, %s62
      %p64 = scmp.eq.s32.totalorder %s63, 0
      %s66 = sadd.s32 %s65, 1
      %s67 = scalar_select %p64, %s65, %s66
      %p70 = pneg %p64
      %p71 = scmp.eq.s32.totalorder %s13, 1
      %p72 = por %p70, %p71
      %p73 = scmp.ne.s32.totalorder %s65, %s68
      %p74 = scmp.eq.s32.totalorder %s13, 0
      %p75 = por %p73, %p74
      %p76 = scmp.ne.s32.totalorder %s65, %s68
      %p77 = scmp.eq.s32.totalorder %s18, 1
      %p78 = por %p76, %p77
      %p79 = scmp.ne.s32.totalorder %s68, %s69
      %p80 = scmp.eq.s32.totalorder %s18, 0
      %p81 = por %p79, %p80
      %p82 = scmp.ne.s32.totalorder %s68, %s69
      %p83 = scmp.eq.s32.totalorder %s19, 1
      %p84 = por %p82, %p83
      %p86 = scmp.ne.s32.totalorder %s69, %s85
      %p87 = scmp.eq.s32.totalorder %s19, 0
      %p88 = por %p86, %p87
      %p89 = scmp.le.s32.totalorder 1, %s13
      %p90 = scmp.lt.s32.totalorder %s13, 3
      %p91 = pnand %p89, %p90
      %p92 = pneg %p91
      // Predicated region
      $region9: #{tpu_custom_call.1} parent=5 // pred_check
        _
      $region10: #{tpu_custom_call.1} parent=5 // pred_check_branch
        %94 = sbr.rel (%p91) target = $region12
      $region11: #{tpu_custom_call.1} parent=5 // pred_region
        %s95 = ssub.s32 %s13, 1
      $region12: #{tpu_custom_call.1} parent=5 // pred_fallthru
        _
      %p96 = scmp.lt.s32.totalorder %s13, 2
      // Predicated region
      $region13: #{tpu_custom_call.1} parent=5 // pred_check
        %p97 = pneg %p96
      $region14: #{tpu_custom_call.1} parent=5 // pred_check_branch
        %99 = sbr.rel (%p97) target = $region16
      $region15: #{tpu_custom_call.1} parent=5 // pred_region
        // Predicated region
        $region17: #{tpu_custom_call.1} parent=15 // pred_check
          %p100 = pneg %p47
        $region18: #{tpu_custom_call.1} parent=15 // pred_check_branch
          %102 = sbr.rel (%p100) target = $region20
        $region19: #{tpu_custom_call.1} parent=15 // pred_region
          %s103 = sand.u32 %s37, 1
          %s104 = scalar_lea.sflag [#allocation3], %s103
          %s105 = sand.u32 %s37, 1
          %s106 = smul.addr %s105, 6
          %s107 = scalar_lea.vmem [#allocation2], %s106
          %s109 = ssub.s32 96, 96
          %110 = vsyncadd %s104, %s109
          %s111 = smul.addr %s20, 3
          %s112 = sadd.s32 %s21, %s111
          %s113 = smul.addr %s112, 32
          %s114 = scalar_lea.hbm %s0, %s113
          %s115 = sshll.u32 %s107, 4
          %s116 = int_to_ptr.vmem [resolvable:$true] %s115
          %121 = dma.hbm_to_vmem [thread:$0]  %s114, 96, %s116, %s104, 32, 32, 2
        $region20: #{tpu_custom_call.1} parent=15 // pred_fallthru
          _
      $region16: #{tpu_custom_call.1} parent=5 // pred_fallthru
        _
      %p122 = scmp.le.s32.totalorder 1, %s13
      %p123 = scmp.lt.s32.totalorder %s13, 3
      %p124 = pnand %p122, %p123
      %p125 = pneg %p124
      // Predicated region
      $region21: #{tpu_custom_call.1} parent=5 // pred_check
        _
      $region22: #{tpu_custom_call.1} parent=5 // pred_check_branch
        %127 = sbr.rel (%p124) target = $region24
      $region23: #{tpu_custom_call.1} parent=5 // pred_region
        %s128 = ssub.s32 %s13, 1
        %s129 = sand.u32 %s40, 1
        %s130 = scalar_lea.sflag [#allocation3], %s129
        %s131 = sand.u32 %s40, 1
        %s132 = smul.addr %s131, 6
        %s133 = scalar_lea.vmem [#allocation2], %s132
        // Predicated region
        $region25: #{tpu_custom_call.1} parent=23 // pred_check
          %p134 = pneg %p53
        $region26: #{tpu_custom_call.1} parent=23 // pred_check_branch
          %136 = sbr.rel (%p134) target = $region28
        $region27: #{tpu_custom_call.1} parent=23 // pred_region
          %137 = dma.done %s130, 96
        $region28: #{tpu_custom_call.1} parent=23 // pred_fallthru
          _
        %s138 = sand.u32 %s40, 1
        %s139 = scalar_lea.sflag [#allocation3], %s138
        %s140 = sand.u32 %s40, 1
        %s141 = smul.addr %s140, 6
        %s142 = scalar_lea.vmem [#allocation2], %s141
        %p143 = pneg %p53
        %p144 = pneg %p50
        %p145 = pneg %p81
        %p146 = pneg %p78
        %s147 = sand.u32 %s68, 1
        %s148 = scalar_lea.sflag [#allocation4], %s147
        %s149 = sand.u32 %s68, 1
        %s150 = smul.addr %s149, 6
        %s151 = scalar_lea.vmem [#allocation5], %s150
        %v152 = vld [vmem:[%s133] sm:$0x3]
        %v153 = vmul.f32 %v152, 4.366812
        %v154 = vadd.f32 %v153, -2.117904
        %155 = vst [vmem:[%s151] sm:$0x3] %v154
        %s156 = scalar_lea.vmem %s133, 2 [#allocation2]
        %v157 = vld [vmem:[%s156] sm:$0x3]
        %v158 = vmul.f32 %v157, 4.464286
        %v159 = vadd.f32 %v158, -2.0357144
        %s160 = scalar_lea.vmem %s151, 2 [#allocation5]
        %161 = vst [vmem:[%s160] sm:$0x3] %v159
        %s162 = scalar_lea.vmem %s133, 4 [#allocation2]
        %v163 = vld [vmem:[%s162] sm:$0x3]
        %v164 = vmul.f32 %v163, 4.4444447
        %v165 = vadd.f32 %v164, -1.8044444
        %s166 = scalar_lea.vmem %s151, 4 [#allocation5]
        %167 = vst [vmem:[%s166] sm:$0x3] %v165
        %s168 = sand.u32 %s68, 1
        %s169 = scalar_lea.sflag [#allocation4], %s168
        %s170 = sand.u32 %s68, 1
        %s171 = smul.addr %s170, 6
        %s172 = scalar_lea.vmem [#allocation5], %s171
        // Predicated region
        $region29: #{tpu_custom_call.1} parent=23 // pred_check
          %p173 = pneg %p78
        $region30: #{tpu_custom_call.1} parent=23 // pred_check_branch
          %175 = sbr.rel (%p173) target = $region32
        $region31: #{tpu_custom_call.1} parent=23 // pred_region
          %s177 = ssub.s32 96, 96
          %178 = vsyncadd %s169, %s177
          %s179 = smul.addr %s22, 3
          %s180 = sadd.s32 %s23, %s179
          %s181 = smul.addr %s180, 32
          %s182 = scalar_lea.hbm %s1, %s181
          %s183 = sshll.u32 %s172, 4
          %s184 = int_to_ptr.vmem [resolvable:$true] %s183
          %189 = dma.vmem_to_hbm [thread:$0]  %s184, 96, %s182, %s169, 32, 32, 2
        $region32: #{tpu_custom_call.1} parent=23 // pred_fallthru
          _
      $region24: #{tpu_custom_call.1} parent=5 // pred_fallthru
        _
      %p190 = scmp.le.s32.totalorder 2, %s13
      // Predicated region
      $region33: #{tpu_custom_call.1} parent=5 // pred_check
        %p191 = pneg %p190
      $region34: #{tpu_custom_call.1} parent=5 // pred_check_branch
        %193 = sbr.rel (%p191) target = $region36
      $region35: #{tpu_custom_call.1} parent=5 // pred_region
        %s194 = ssub.s32 %s13, 2
        // Predicated region
        $region37: #{tpu_custom_call.1} parent=35 // pred_check
          %p195 = pneg %p84
        $region38: #{tpu_custom_call.1} parent=35 // pred_check_branch
          %197 = sbr.rel (%p195) target = $region40
        $region39: #{tpu_custom_call.1} parent=35 // pred_region
          %s198 = sand.u32 %s69, 1
          %s199 = scalar_lea.sflag [#allocation4], %s198
          %s200 = sand.u32 %s69, 1
          %s201 = smul.addr %s200, 6
          %s202 = scalar_lea.vmem [#allocation5], %s201
          %203 = dma.done %s199, 96
        $region40: #{tpu_custom_call.1} parent=35 // pred_fallthru
          _
      $region36: #{tpu_custom_call.1} parent=5 // pred_fallthru
        _
    $region6: #{tpu_custom_call.1} parent=1 // loop_footer
      %s17 = sadd.s32 1, %s13
    $region7: #{tpu_custom_call.1} parent=1 // loop_footer_branch
      %12 = sbr.rel target = $region3
    $region8: #{tpu_custom_call.1} parent=1 // loop_exit
      _
    %204 = vsyncpa [#allocation3], 1
    %s205 = scalar_lea.sflag [#allocation3], 1
    %206 = vsyncpa %s205, 1
    %207 = vsyncpa [#allocation4], 1
    %s208 = scalar_lea.sflag [#allocation4], 1
    %209 = vsyncpa %s208, 1

</llo_original>
